<compile_context>
chip_gen: v7x
topology: tpu7x:2x2x1
jax: 0.10.0
libtpu: 0.0.40
codegen_flags: <defaults>
</compile_context>

<pallas_src>
import math
import functools
import numpy as np
import jax
import jax.numpy as jnp
from jax.experimental import pallas as pl
from jax.experimental.pallas import tpu as pltpu


# ----------------------------------------------------------------------------
# Deterministic parameter construction (mirrors init_kernel in the PyTorch code)
# ----------------------------------------------------------------------------
def init_kernel_np(frame_len, frame_hop, normalize=True, round_pow_of_two=True,
                   window="sqrt_hann"):
    assert window in ("sqrt_hann", "hann")
    N = 2 ** int(math.ceil(math.log2(frame_len))) if round_pow_of_two else frame_len
    # torch.hann_window(frame_len) is periodic: w[n] = 0.5 - 0.5*cos(2*pi*n/L)
    n = np.arange(frame_len, dtype=np.float64)
    W = 0.5 - 0.5 * np.cos(2.0 * np.pi * n / frame_len)
    if window == "sqrt_hann":
        W = np.sqrt(W)
    if window == "sqrt_hann" and normalize:
        S = 0.5 * (N * N / frame_hop) ** 0.5
    else:
        S = 1.0
    K_cplx = np.fft.rfft(np.eye(N) / S, axis=-1)           # (N, F)
    K_ri = np.stack([K_cplx.real, K_cplx.imag], axis=-1)   # (N, F, 2)
    K_ri = K_ri[:frame_len]                                # (L, F, 2)
    K = np.transpose(K_ri, (2, 1, 0)) * W                  # (2, F, L)
    K = K.reshape(N + 2, 1, frame_len)                     # conv1d kernel (N+2, 1, L)
    return K.astype(np.float32), N


def _round_up(x, m):
    return ((x + m - 1) // m) * m


def _cdiv(a, b):
    return (a + b - 1) // b


# ----------------------------------------------------------------------------
# In-kernel atan2 (octant reduction + minimax polynomial + quadrant selects).
# Only uses ops guaranteed to lower on Mosaic (abs/min/max/div/mul/add/where).
# ----------------------------------------------------------------------------
_PI = np.float32(np.pi)
_PI_2 = np.float32(np.pi / 2.0)
_TINY = np.float32(1e-30)


def _atan_poly(t):
    # float32 minimax polynomial for atan(t), valid for t in [0, 1].
    s = t * t
    u = jnp.float32(0.00282363896258175373)
    u = u * s + jnp.float32(-0.01595690287649631500)
    u = u * s + jnp.float32(0.04250498861074447632)
    u = u * s + jnp.float32(-0.07489009201526641846)
    u = u * s + jnp.float32(0.10634793341159820557)
    u = u * s + jnp.float32(-0.14202736318111419678)
    u = u * s + jnp.float32(0.19992695748805999756)
    u = u * s + jnp.float32(-0.33333101868629455566)
    return t + t * s * u


def _atan2(y, x):
    # Matches torch.atan2 conventions: atan2(0, 0) = 0, atan2(0, -x) = +pi.
    ax = jnp.abs(x)
    ay = jnp.abs(y)
    mx = jnp.maximum(ax, ay)
    mn = jnp.minimum(ax, ay)
    a = _atan_poly(mn / jnp.maximum(mx, _TINY))       # angle in [0, pi/4]
    a = jnp.where(ay > ax, _PI_2 - a, a)              # first quadrant angle
    a = jnp.where(x < 0.0, _PI - a, a)                # reflect for x < 0
    return jnp.where(y < 0.0, -a, a)                  # sign from y


# ----------------------------------------------------------------------------
# Pallas kernel: rebuild frames (time on lanes), one MXU matmul, mag/phase
# ----------------------------------------------------------------------------
def _stft_kernel(cur_ref, halo_ref, kT_ref, m_ref, p_ref, *, hop, frame_len, fpad):
    # cur_ref : (1, hop, TT)   signal chunks, time on lanes
    # halo_ref: (1, hop, 128)  next 128 chunk-columns (for frames straddling the tile)
    # kT_ref  : (2*fpad, L)    [real | imag] analysis filters, frequency on sublanes
    # m_ref/p_ref: (1, fpad, TT)
    L = frame_len
    k = _cdiv(L, hop)
    cur = cur_ref[0]                                   # (hop, TT)
    TT = cur.shape[-1]
    if k > 1:
        win = jnp.concatenate([cur, halo_ref[0]], axis=1)   # (hop, TT + 128)
    else:
        win = cur
    # frames_T[l, t] = signal[t*hop + l]; with l = j*hop + r this is a static
    # lane-shift of the chunked signal: block_j = win[:rows_j, j : j + TT].
    blocks = []
    for j in range(k):                                 # static python unroll
        rows = min(hop, L - j * hop)
        blocks.append(win[:rows, j:j + TT])
    frames_T = blocks[0] if len(blocks) == 1 else jnp.concatenate(blocks, axis=0)  # (L, TT)

    rc = jnp.dot(kT_ref[...], frames_T,
                 preferred_element_type=jnp.float32)   # (2*fpad, TT)
    r = rc[:fpad, :]
    i = rc[fpad:, :]
    m_ref[0] = jnp.sqrt(r * r + i * i)
    p_ref[0] = _atan2(i, r)


def stft_pallas(x, K, frame_hop, tile_t=1024, vmem_budget_bytes=12 * 1024 * 1024):
    """x: (N, C, S) or (N, S) float. K: conv1d kernel (nfft+2, 1, L).
    Returns (m, p), each (N, C, F, T) (or (N, F, T) for 2-D input), matching
    the PyTorch STFT.forward (cplx=False) semantics."""
    squeeze_c = x.ndim == 2
    if squeeze_c:
        x = x[:, None, :]
    B, C, S = x.shape
    F2, _, L = K.shape
    Fb = F2 // 2
    hop = int(frame_hop)
    assert S >= L, "signal shorter than frame length"
    T = (S - L) // hop + 1
    assert T >= 1
    BC = B * C
    k = _cdiv(L, hop)
    assert k - 1 <= 128, "frame overlap too large for the 128-column halo"
    Fp = _round_up(Fb, 8)                # frequency padded to sublanes (<= 7 wasted rows)

    # --- time tile: multiple of 128 lanes, minimal padding, VMEM-capped -----
    nt = max(1, _cdiv(T, tile_t))
    TT = _round_up(_cdiv(T, nt), 128)

    def _vmem_bytes(tt):                 # double-buffered f32 blocks (approximate)
        return 2 * 4 * (hop * tt + hop * 128 + 2 * Fp * L + 2 * Fp * tt)

    while TT > 128 and _vmem_bytes(TT) > vmem_budget_bytes:
        TT -= 128
    num_tiles = _cdiv(T, TT)
    Ttot = num_tiles * TT
    tt_blocks = TT // 128

    # --- signal -> hop-sized chunks with time on the lane axis ---------------
    # sig_T[bc, r, c] = x[bc, c*hop + r]; ONE cheap pass over the raw samples
    # (no L/hop-fold frame duplication, no XLA gather).
    Ctot = Ttot + 128                    # +128 halo columns for the last tile
    Stot = Ctot * hop
    xs = x.reshape(BC, S).astype(jnp.float32)
    xs = jnp.pad(xs, ((0, 0), (0, max(0, Stot - S))))[:, :Stot]
    sig_T = xs.reshape(BC, Ctot, hop).transpose(0, 2, 1)      # (BC, hop, Ctot)
    # TODO(synk): fold this chunk-transpose into the kernel (manual DMA of
    # contiguous sample windows) to remove the one remaining XLA pass over x.

    # --- fused [real | imag] analysis filters, frequency on sublanes ---------
    Kmat = np.asarray(K[:, 0, :], dtype=np.float32)            # (2*Fb, L)
    KT = np.zeros((2 * Fp, L), dtype=np.float32)
    KT[:Fb, :] = Kmat[:Fb, :]
    KT[Fp:Fp + Fb, :] = Kmat[Fb:, :]
    KT = jnp.asarray(KT)

    grid = (BC, num_tiles)
    kernel = functools.partial(_stft_kernel, hop=hop, frame_len=L, fpad=Fp)

    cost = pl.CostEstimate(
        flops=int(2 * BC * num_tiles * TT * L * (2 * Fp)),
        transcendentals=int(2 * BC * num_tiles * TT * Fp),
        bytes_accessed=int(4 * (BC * num_tiles * hop * (TT + 128)
                                + 2 * Fp * L + 2 * BC * Fp * Ttot)),
    )

    # NOTE: the grid-invariant KT block could be single-buffered
    # (pipeline_mode=pl.Buffered(1)) to save VMEM on v7x at large frame_len;
    # bf16 outputs would halve the dominant writeback if the consumer allows.
    m_out, p_out = pl.pallas_call(
        kernel,
        grid=grid,
        in_specs=[
            pl.BlockSpec((1, hop, TT), lambda bc, tt: (bc, 0, tt)),
            pl.BlockSpec((1, hop, 128),
                         lambda bc, tt: (bc, 0, (tt + 1) * tt_blocks)),
            pl.BlockSpec((2 * Fp, L), lambda bc, tt: (0, 0)),
        ],
        out_specs=(
            pl.BlockSpec((1, Fp, TT), lambda bc, tt: (bc, 0, tt)),
            pl.BlockSpec((1, Fp, TT), lambda bc, tt: (bc, 0, tt)),
        ),
        out_shape=(
            jax.ShapeDtypeStruct((BC, Fp, Ttot), jnp.float32),
            jax.ShapeDtypeStruct((BC, Fp, Ttot), jnp.float32),
        ),
        compiler_params=pltpu.CompilerParams(
            dimension_semantics=("parallel", "parallel"),
        ),
        cost_estimate=cost,
    )(sig_T, sig_T, KT)

    # Output is already (F, T)-major: just slice padded bins/frames, no transpose.
    m = m_out[:, :Fb, :T].reshape(B, C, Fb, T)
    p = p_out[:, :Fb, :T].reshape(B, C, Fb, T)
    if squeeze_c:
        m, p = m[:, 0], p[:, 0]
    return m, p


# ----------------------------------------------------------------------------
# Reference (pure JAX / XLA) for correctness checking
# ----------------------------------------------------------------------------
def stft_ref(x, K, frame_hop):
    if x.ndim == 2:
        x = x[:, None, :]
    B, C, S = x.shape
    F2, _, L = K.shape
    Fb = F2 // 2
    T = (S - L) // frame_hop + 1
    idx = np.arange(T)[:, None] * frame_hop + np.arange(L)[None, :]
    frames = x.reshape(B * C, S)[:, idx]                      # (B*C, T, L)
    Kmat = jnp.asarray(np.asarray(K)[:, 0, :])                # (F2, L)
    c = jnp.einsum("btl,fl->bft", frames, Kmat,
                   precision=jax.lax.Precision.HIGHEST)       # (B*C, F2, T)
    c = c.reshape(B, C, F2, T)
    r, i = c[:, :, :Fb], c[:, :, Fb:]
    return jnp.sqrt(r * r + i * i), jnp.arctan2(i, r)


if __name__ == "__main__":
    frame_len, frame_hop = 32, 16
    K, Nfft = init_kernel_np(frame_len, frame_hop)            # (Nfft+2, 1, 32)

    key = jax.random.PRNGKey(0)
    B, C, S = 2, 3, 160
    x = jax.random.normal(key, (B, C, S), dtype=jnp.float32)

    m, p = stft_pallas(x, K, frame_hop)
    m = jax.block_until_ready(m)
    p = jax.block_until_ready(p)

    m_ref, p_ref = stft_ref(x, K, frame_hop)
    Fb = Nfft // 2 + 1
    T = (S - frame_len) // frame_hop + 1
    assert m.shape == (B, C, Fb, T) and p.shape == (B, C, Fb, T)

    m_np, p_np = np.asarray(m), np.asarray(p)
    m_rnp, p_rnp = np.asarray(m_ref), np.asarray(p_ref)
    np.testing.assert_allclose(m_np, m_rnp, rtol=2e-3, atol=2e-4)
    mask = m_rnp > 1e-2                  # phase is ill-conditioned at tiny magnitudes
    np.testing.assert_allclose(p_np[mask], p_rnp[mask], rtol=0, atol=2e-3)

    # also exercise the 2-D (N, S) path
    m2, p2 = stft_pallas(x[:, 0, :], K, frame_hop)
    m2 = jax.block_until_ready(m2)
    np.testing.assert_allclose(np.asarray(m2), m_rnp[:, 0], rtol=2e-3, atol=2e-4)

    print("KERNEL_OK")
</pallas_src>

<mosaic_0001>
module attributes {stable_mosaic.version = 11 : i64} {
  func.func @_stft_kernel(%arg0: i32, %arg1: i32, %arg2: memref<1x16x128xf32, #tpu.memory_space<vmem>>, %arg3: memref<1x16x128xf32, #tpu.memory_space<vmem>>, %arg4: memref<48x32xf32, #tpu.memory_space<vmem>>, %arg5: memref<1x24x128xf32, #tpu.memory_space<vmem>>, %arg6: memref<1x24x128xf32, #tpu.memory_space<vmem>>) attributes {dimension_semantics = [#tpu.dimension_semantics<parallel>, #tpu.dimension_semantics<parallel>], iteration_bounds = array<i64: 6, 1>, scalar_prefetch = 0 : i64, scratch_operands = 0 : i64, tpu.core_type = #tpu.core_type<tc>, window_params = [{transform_indices = @transform_0, window_bounds = array<i64: 1, 16, 128>}, {transform_indices = @transform_1, window_bounds = array<i64: 1, 16, 128>}, {pipeline_mode = #tpu.pipeline_mode<synchronous>, transform_indices = @transform_2, window_bounds = array<i64: 48, 32>}, {transform_indices = @transform_3, window_bounds = array<i64: 1, 24, 128>}, {transform_indices = @transform_4, window_bounds = array<i64: 1, 24, 128>}]} {
    %c0 = arith.constant 0 : index
    %c0_0 = arith.constant 0 : index
    %c0_1 = arith.constant 0 : index
    %0 = vector.load %arg2[%c0, %c0_0, %c0_1] : memref<1x16x128xf32, #tpu.memory_space<vmem>>, vector<1x16x128xf32>
    %1 = vector.shape_cast %0 : vector<1x16x128xf32> to vector<16x128xf32>
    %c0_2 = arith.constant 0 : index
    %c0_3 = arith.constant 0 : index
    %c0_4 = arith.constant 0 : index
    %2 = vector.load %arg3[%c0_2, %c0_3, %c0_4] : memref<1x16x128xf32, #tpu.memory_space<vmem>>, vector<1x16x128xf32>
    %3 = vector.shape_cast %2 : vector<1x16x128xf32> to vector<16x128xf32>
    %4 = tpu.concatenate %1, %3 in 1 : vector<16x128xf32>, vector<16x128xf32> -> vector<16x256xf32>
    %5 = vector.extract_strided_slice %4 {offsets = [0, 0], sizes = [16, 128], strides = [1, 1]} : vector<16x256xf32> to vector<16x128xf32>
    %6 = vector.extract_strided_slice %4 {offsets = [0, 1], sizes = [16, 128], strides = [1, 1]} : vector<16x256xf32> to vector<16x128xf32>
    %7 = tpu.concatenate %5, %6 in 0 : vector<16x128xf32>, vector<16x128xf32> -> vector<32x128xf32>
    %c0_5 = arith.constant 0 : index
    %c0_6 = arith.constant 0 : index
    %8 = vector.load %arg4[%c0_5, %c0_6] : memref<48x32xf32, #tpu.memory_space<vmem>>, vector<48x32xf32>
    %cst = arith.constant dense<0.000000e+00> : vector<48x128xf32>
    %9 = tpu.matmul %8, %7, %cst {dimension_numbers = #tpu.dot_dimension_numbers<[1], [0], [0], [1], [0, 0, 1, 1], [], []>} : vector<48x32xf32>, vector<32x128xf32>, vector<48x128xf32> -> vector<48x128xf32>
    %10 = vector.extract_strided_slice %9 {offsets = [0, 0], sizes = [24, 128], strides = [1, 1]} : vector<48x128xf32> to vector<24x128xf32>
    %11 = vector.extract_strided_slice %9 {offsets = [24, 0], sizes = [24, 128], strides = [1, 1]} : vector<48x128xf32> to vector<24x128xf32>
    %12 = arith.mulf %10, %10 : vector<24x128xf32>
    %13 = arith.mulf %11, %11 : vector<24x128xf32>
    %14 = arith.addf %12, %13 : vector<24x128xf32>
    %15 = math.sqrt %14 : vector<24x128xf32>
    %c0_7 = arith.constant 0 : index
    %c0_8 = arith.constant 0 : index
    %c0_9 = arith.constant 0 : index
    %16 = vector.load %arg5[%c0_7, %c0_8, %c0_9] : memref<1x24x128xf32, #tpu.memory_space<vmem>>, vector<1x24x128xf32>
    %17 = vector.shape_cast %16 : vector<1x24x128xf32> to vector<24x128xf32>
    %18 = vector.shape_cast %15 : vector<24x128xf32> to vector<1x24x128xf32>
    tpu.vector_store %arg5[%c0_7, %c0_8, %c0_9], %18 {strides = array<i32>} : memref<1x24x128xf32, #tpu.memory_space<vmem>>, vector<1x24x128xf32>,
    %19 = math.absf %10 : vector<24x128xf32>
    %20 = math.absf %11 : vector<24x128xf32>
    %21 = arith.maximumf %19, %20 : vector<24x128xf32>
    %22 = arith.minimumf %19, %20 : vector<24x128xf32>
    %cst_10 = arith.constant 1.000000e-30 : f32
    %23 = vector.broadcast %cst_10 : f32 to vector<24x128xf32>
    %24 = arith.maximumf %21, %23 : vector<24x128xf32>
    %25 = arith.divf %22, %24 : vector<24x128xf32>
    %26 = arith.mulf %25, %25 : vector<24x128xf32>
    %cst_11 = arith.constant 0.00282363896 : f32
    %27 = vector.broadcast %cst_11 : f32 to vector<24x128xf32>
    %28 = arith.mulf %27, %26 : vector<24x128xf32>
    %cst_12 = arith.constant -0.0159569029 : f32
    %29 = vector.broadcast %cst_12 : f32 to vector<24x128xf32>
    %30 = arith.addf %28, %29 : vector<24x128xf32>
    %31 = arith.mulf %30, %26 : vector<24x128xf32>
    %cst_13 = arith.constant 0.0425049886 : f32
    %32 = vector.broadcast %cst_13 : f32 to vector<24x128xf32>
    %33 = arith.addf %31, %32 : vector<24x128xf32>
    %34 = arith.mulf %33, %26 : vector<24x128xf32>
    %cst_14 = arith.constant -0.074890092 : f32
    %35 = vector.broadcast %cst_14 : f32 to vector<24x128xf32>
    %36 = arith.addf %34, %35 : vector<24x128xf32>
    %37 = arith.mulf %36, %26 : vector<24x128xf32>
    %cst_15 = arith.constant 0.106347933 : f32
    %38 = vector.broadcast %cst_15 : f32 to vector<24x128xf32>
    %39 = arith.addf %37, %38 : vector<24x128xf32>
    %40 = arith.mulf %39, %26 : vector<24x128xf32>
    %cst_16 = arith.constant -0.142027363 : f32
    %41 = vector.broadcast %cst_16 : f32 to vector<24x128xf32>
    %42 = arith.addf %40, %41 : vector<24x128xf32>
    %43 = arith.mulf %42, %26 : vector<24x128xf32>
    %cst_17 = arith.constant 0.199926957 : f32
    %44 = vector.broadcast %cst_17 : f32 to vector<24x128xf32>
    %45 = arith.addf %43, %44 : vector<24x128xf32>
    %46 = arith.mulf %45, %26 : vector<24x128xf32>
    %cst_18 = arith.constant -0.333331019 : f32
    %47 = vector.broadcast %cst_18 : f32 to vector<24x128xf32>
    %48 = arith.addf %46, %47 : vector<24x128xf32>
    %49 = arith.mulf %25, %26 : vector<24x128xf32>
    %50 = arith.mulf %49, %48 : vector<24x128xf32>
    %51 = arith.addf %25, %50 : vector<24x128xf32>
    %52 = arith.cmpf ogt, %20, %19 : vector<24x128xf32>
    %cst_19 = arith.constant 1.57079637 : f32
    %53 = vector.broadcast %cst_19 : f32 to vector<24x128xf32>
    %54 = arith.subf %53, %51 : vector<24x128xf32>
    %55 = arith.select %52, %54, %51 : vector<24x128xi1>, vector<24x128xf32>
    %cst_20 = arith.constant 0.000000e+00 : f32
    %56 = vector.broadcast %cst_20 : f32 to vector<24x128xf32>
    %57 = arith.cmpf olt, %10, %56 : vector<24x128xf32>
    %cst_21 = arith.constant 3.14159274 : f32
    %58 = vector.broadcast %cst_21 : f32 to vector<24x128xf32>
    %59 = arith.subf %58, %55 : vector<24x128xf32>
    %60 = arith.select %57, %59, %55 : vector<24x128xi1>, vector<24x128xf32>
    %cst_22 = arith.constant 0.000000e+00 : f32
    %61 = vector.broadcast %cst_22 : f32 to vector<24x128xf32>
    %62 = arith.cmpf olt, %11, %61 : vector<24x128xf32>
    %cst_23 = arith.constant 0.000000e+00 : f32
    %63 = vector.broadcast %cst_23 : f32 to vector<24x128xf32>
    %64 = arith.subf %63, %60 : vector<24x128xf32>
    %65 = arith.select %62, %64, %60 : vector<24x128xi1>, vector<24x128xf32>
    %c0_24 = arith.constant 0 : index
    %c0_25 = arith.constant 0 : index
    %c0_26 = arith.constant 0 : index
    %66 = vector.load %arg6[%c0_24, %c0_25, %c0_26] : memref<1x24x128xf32, #tpu.memory_space<vmem>>, vector<1x24x128xf32>
    %67 = vector.shape_cast %66 : vector<1x24x128xf32> to vector<24x128xf32>
    %68 = vector.shape_cast %65 : vector<24x128xf32> to vector<1x24x128xf32>
    tpu.vector_store %arg6[%c0_24, %c0_25, %c0_26], %68 {strides = array<i32>} : memref<1x24x128xf32, #tpu.memory_space<vmem>>, vector<1x24x128xf32>,
    return
  }
  func.func @transform_0(%arg0: i32, %arg1: i32) -> (i32, i32, i32) {
    %c0_i32 = arith.constant 0 : i32
    %c0_i32_0 = arith.constant 0 : i32
    return %arg0, %c0_i32, %arg1 : i32, i32, i32
  }
  func.func @transform_1(%arg0: i32, %arg1: i32) -> (i32, i32, i32) {
    %c1_i32 = arith.constant 1 : i32
    %0 = arith.addi %arg1, %c1_i32 : i32
    %c1_i32_0 = arith.constant 1 : i32
    %1 = arith.muli %0, %c1_i32_0 : i32
    %c0_i32 = arith.constant 0 : i32
    %c0_i32_1 = arith.constant 0 : i32
    return %arg0, %c0_i32, %1 : i32, i32, i32
  }
  func.func @transform_2(%arg0: i32, %arg1: i32) -> (i32, i32) {
    %c0_i32 = arith.constant 0 : i32
    %c0_i32_0 = arith.constant 0 : i32
    %c0_i32_1 = arith.constant 0 : i32
    return %c0_i32, %c0_i32_0 : i32, i32
  }
  func.func @transform_3(%arg0: i32, %arg1: i32) -> (i32, i32, i32) {
    %c0_i32 = arith.constant 0 : i32
    %c0_i32_0 = arith.constant 0 : i32
    return %arg0, %c0_i32, %arg1 : i32, i32, i32
  }
  func.func @transform_4(%arg0: i32, %arg1: i32) -> (i32, i32, i32) {
    %c0_i32 = arith.constant 0 : i32
    %c0_i32_0 = arith.constant 0 : i32
    return %arg0, %c0_i32, %arg1 : i32, i32, i32
  }
}

</mosaic_0001>

<llo_original>
// kernel: tpu_custom_call.1
$region0: #{tpu_custom_call.1}
  #allocation0 [shape = 'u32[]', space=smem, size = 0x4, offset = 0x4, fixed_abs, tag = 'smem constant byte address 0x4 - core index']
  #allocation1 [shape = 'u32[144,128]{1,0:T(1,128)}', space=vmem, size = 0x12000, scoped, tag = 'internal scratch']
  %s0 = inlined_call_operand.hbm [shape: f32[6,16,256], index: 0, kind: input, shape index: {}]
  %s1 = inlined_call_operand.hbm [shape: f32[6,16,256], index: 1, kind: input, shape index: {}]
  %s2 = inlined_call_operand.vmem [shape: f32[48,32], index: 2, kind: input, shape index: {}]
  %s3 = inlined_call_operand.hbm [shape: f32[6,24,128], index: 3, kind: output, shape index: {0}]
  %s4 = inlined_call_operand.hbm [shape: f32[6,24,128], index: 4, kind: output, shape index: {1}]
  %5 = xla_tuple %s3, %s4
  %s6 = sld [smem:[#allocation0]]
  $region61: #{tpu_custom_call.1} parent=0
    _
  %s8 = ssub.s32 1, %s6
  %s9 = scalar_select 0, %s8, %s6
  $region1: #{tpu_custom_call.1} parent=0
    #allocation2 [shape = 'u8[16384]{0}', space=vmem, size = 0x4000, scoped, tag = 'input window, operand 0']
    #allocation3 [shape = 's32[2]{0}', space=sflag, size = 0x8, scoped, tag = 'scoped memory for tpu_custom_call.1']
    #allocation4 [shape = 's32[2]{0}', space=sflag, size = 0x8, scoped, tag = 'scoped memory for tpu_custom_call.1']
    #allocation5 [shape = 'u8[16384]{0}', space=vmem, size = 0x4000, scoped, tag = 'input window, operand 1']
    #allocation6 [shape = 's32[2]{0}', space=sflag, size = 0x8, scoped, tag = 'scoped memory for tpu_custom_call.1']
    #allocation7 [shape = 'u8[24576]{0}', space=vmem, size = 0x6000, scoped, tag = 'output window, operand 0']
    #allocation8 [shape = 'u8[24576]{0}', space=vmem, size = 0x6000, scoped, tag = 'output window, operand 1']
    #allocation9 [shape = 's32[2]{0}', space=sflag, size = 0x8, scoped, tag = 'scoped memory for tpu_custom_call.1']
    %10 = vsyncpa [#allocation3], 0
    %s11 = scalar_lea.sflag [#allocation3], 1
    %12 = vsyncpa %s11, 0
    %13 = vsyncpa [#allocation6], 0
    %s14 = scalar_lea.sflag [#allocation6], 1
    %15 = vsyncpa %s14, 0
    %16 = vsyncpa [#allocation4], 0
    %s17 = scalar_lea.sflag [#allocation4], 1
    %18 = vsyncpa %s17, 0
    %19 = vsyncpa [#allocation9], 0
    %s20 = scalar_lea.sflag [#allocation9], 1
    %21 = vsyncpa %s20, 0
    loop: start=0, step=1, limit=8
    $region2: #{tpu_custom_call.1} parent=1 // loop_pre_header
      _
    $region3: #{tpu_custom_call.1} parent=1 // loop_header
      %s23 = sphi 0, %s27
      %p24 = scmp.ge.s32.totalorder %s23, 8
      %s30 = sphi 0, %s42
      %s31 = sphi 0, %s38
      %s32 = sphi 0, %s30
      %s33 = sphi 0, %s31
      %s34 = sphi 0, %s32
      %s35 = sphi 0, %s33
      %s47 = sphi 0, %s49
      %s50 = sphi 0, %s47
      %s51 = sphi 0, %s50
      %s67 = sphi 0, %s51
      %s77 = sphi 0, %s79
      %s80 = sphi 0, %s77
      %s81 = sphi 0, %s80
      %s97 = sphi 0, %s81
      %s101 = sphi 0, %s101
      %s103 = sphi 0, %s101
      %s104 = sphi 0, %s103
      %s118 = sphi 0, %s104
      %s126 = sphi 0, %s128
      %s129 = sphi 0, %s126
      %s130 = sphi 0, %s129
      %s146 = sphi 0, %s130
      %s154 = sphi 0, %s156
      %s157 = sphi 0, %s154
      %s158 = sphi 0, %s157
      %s174 = sphi 0, %s158
    $region4: #{tpu_custom_call.1} parent=1 // loop_header_branch
      %26 = sbr.rel (%p24) target = $region8
    $region5: #{tpu_custom_call.1} parent=1 // loop_body
      %s28 = ssub.s32 %s23, 1
      %s29 = ssub.s32 %s23, 2
      %s36 = sadd.s32 1, %s31
      %p37 = scmp.ge.s32.totalorder %s36, 1
      %s38 = scalar_select %p37, 0, %s36
      %s39 = sadd.s32 1, %s30
      %s40 = scalar_select %p37, %s39, %s30
      %p41 = scmp.ge.s32.totalorder %s40, 6
      %s42 = scalar_select %p41, 0, %s40
      %s43 = ssub.s32 %s30, %s42
      %s44 = ssub.s32 %s31, %s38
      %s45 = sor.u32 %s43, %s44
      %p46 = scmp.eq.s32.totalorder %s45, 0
      %s48 = sadd.s32 %s47, 1
      %s49 = scalar_select %p46, %s47, %s48
      %p52 = pneg %p46
      %p53 = scmp.eq.s32.totalorder %s23, 5
      %p54 = por %p52, %p53
      %p55 = scmp.ne.s32.totalorder %s47, %s50
      %p56 = scmp.eq.s32.totalorder %s23, 0
      %p57 = por %p55, %p56
      %p58 = scmp.ne.s32.totalorder %s47, %s50
      %p59 = scmp.eq.s32.totalorder %s28, 5
      %p60 = por %p58, %p59
      %p61 = scmp.ne.s32.totalorder %s50, %s51
      %p62 = scmp.eq.s32.totalorder %s28, 0
      %p63 = por %p61, %p62
      %p64 = scmp.ne.s32.totalorder %s50, %s51
      %p65 = scmp.eq.s32.totalorder %s29, 5
      %p66 = por %p64, %p65
      %p68 = scmp.ne.s32.totalorder %s51, %s67
      %p69 = scmp.eq.s32.totalorder %s29, 0
      %p70 = por %p68, %p69
      %s71 = sadd.s32 %s31, 1
      %s72 = sadd.s32 %s38, 1
      %s73 = ssub.s32 %s30, %s42
      %s74 = ssub.s32 %s71, %s72
      %s75 = sor.u32 %s73, %s74
      %p76 = scmp.eq.s32.totalorder %s75, 0
      %s78 = sadd.s32 %s77, 1
      %s79 = scalar_select %p76, %s77, %s78
      %p82 = pneg %p76
      %p83 = scmp.eq.s32.totalorder %s23, 5
      %p84 = por %p82, %p83
      %p85 = scmp.ne.s32.totalorder %s77, %s80
      %p86 = scmp.eq.s32.totalorder %s23, 0
      %p87 = por %p85, %p86
      %p88 = scmp.ne.s32.totalorder %s77, %s80
      %p89 = scmp.eq.s32.totalorder %s28, 5
      %p90 = por %p88, %p89
      %p91 = scmp.ne.s32.totalorder %s80, %s81
      %p92 = scmp.eq.s32.totalorder %s28, 0
      %p93 = por %p91, %p92
      %p94 = scmp.ne.s32.totalorder %s80, %s81
      %p95 = scmp.eq.s32.totalorder %s29, 5
      %p96 = por %p94, %p95
      %p98 = scmp.ne.s32.totalorder %s81, %s97
      %p99 = scmp.eq.s32.totalorder %s29, 0
      %p100 = por %p98, %p99
      %s102 = sadd.s32 %s101, 1
      %p105 = scmp.eq.s32.totalorder %s23, 5
      %p106 = scmp.ne.s32.totalorder %s101, %s103
      %p107 = scmp.eq.s32.totalorder %s23, 0
      %p108 = por %p106, %p107
      %p109 = scmp.ne.s32.totalorder %s101, %s103
      %p110 = scmp.eq.s32.totalorder %s28, 5
      %p111 = por %p109, %p110
      %p112 = scmp.ne.s32.totalorder %s103, %s104
      %p113 = scmp.eq.s32.totalorder %s28, 0
      %p114 = por %p112, %p113
      %p115 = scmp.ne.s32.totalorder %s103, %s104
      %p116 = scmp.eq.s32.totalorder %s29, 5
      %p117 = por %p115, %p116
      %p119 = scmp.ne.s32.totalorder %s104, %s118
      %p120 = scmp.eq.s32.totalorder %s29, 0
      %p121 = por %p119, %p120
      %s122 = ssub.s32 %s30, %s42
      %s123 = ssub.s32 %s31, %s38
      %s124 = sor.u32 %s122, %s123
      %p125 = scmp.eq.s32.totalorder %s124, 0
      %s127 = sadd.s32 %s126, 1
      %s128 = scalar_select %p125, %s126, %s127
      %p131 = pneg %p125
      %p132 = scmp.eq.s32.totalorder %s23, 5
      %p133 = por %p131, %p132
      %p134 = scmp.ne.s32.totalorder %s126, %s129
      %p135 = scmp.eq.s32.totalorder %s23, 0
      %p136 = por %p134, %p135
      %p137 = scmp.ne.s32.totalorder %s126, %s129
      %p138 = scmp.eq.s32.totalorder %s28, 5
      %p139 = por %p137, %p138
      %p140 = scmp.ne.s32.totalorder %s129, %s130
      %p141 = scmp.eq.s32.totalorder %s28, 0
      %p142 = por %p140, %p141
      %p143 = scmp.ne.s32.totalorder %s129, %s130
      %p144 = scmp.eq.s32.totalorder %s29, 5
      %p145 = por %p143, %p144
      %p147 = scmp.ne.s32.totalorder %s130, %s146
      %p148 = scmp.eq.s32.totalorder %s29, 0
      %p149 = por %p147, %p148
      %s150 = ssub.s32 %s30, %s42
      %s151 = ssub.s32 %s31, %s38
      %s152 = sor.u32 %s150, %s151
      %p153 = scmp.eq.s32.totalorder %s152, 0
      %s155 = sadd.s32 %s154, 1
      %s156 = scalar_select %p153, %s154, %s155
      %p159 = pneg %p153
      %p160 = scmp.eq.s32.totalorder %s23, 5
      %p161 = por %p159, %p160
      %p162 = scmp.ne.s32.totalorder %s154, %s157
      %p163 = scmp.eq.s32.totalorder %s23, 0
      %p164 = por %p162, %p163
      %p165 = scmp.ne.s32.totalorder %s154, %s157
      %p166 = scmp.eq.s32.totalorder %s28, 5
      %p167 = por %p165, %p166
      %p168 = scmp.ne.s32.totalorder %s157, %s158
      %p169 = scmp.eq.s32.totalorder %s28, 0
      %p170 = por %p168, %p169
      %p171 = scmp.ne.s32.totalorder %s157, %s158
      %p172 = scmp.eq.s32.totalorder %s29, 5
      %p173 = por %p171, %p172
      %p175 = scmp.ne.s32.totalorder %s158, %s174
      %p176 = scmp.eq.s32.totalorder %s29, 0
      %p177 = por %p175, %p176
      %p178 = scmp.le.s32.totalorder 1, %s23
      %p179 = scmp.lt.s32.totalorder %s23, 7
      %p180 = pnand %p178, %p179
      %p181 = pneg %p180
      // Predicated region
      $region9: #{tpu_custom_call.1} parent=5 // pred_check
        _
      $region10: #{tpu_custom_call.1} parent=5 // pred_check_branch
        %183 = sbr.rel (%p180) target = $region12
      $region11: #{tpu_custom_call.1} parent=5 // pred_region
        %s184 = ssub.s32 %s23, 1
        // Predicated region
        $region13: #{tpu_custom_call.1} parent=11 // pred_check
          %p185 = pneg %p114
        $region14: #{tpu_custom_call.1} parent=11 // pred_check_branch
          %187 = sbr.rel (%p185) target = $region16
        $region15: #{tpu_custom_call.1} parent=11 // pred_region
          _
        $region16: #{tpu_custom_call.1} parent=11 // pred_fallthru
          _
      $region12: #{tpu_custom_call.1} parent=5 // pred_fallthru
        _
      %p188 = scmp.lt.s32.totalorder %s23, 6
      // Predicated region
      $region17: #{tpu_custom_call.1} parent=5 // pred_check
        %p189 = pneg %p188
      $region18: #{tpu_custom_call.1} parent=5 // pred_check_branch
        %191 = sbr.rel (%p189) target = $region20
      $region19: #{tpu_custom_call.1} parent=5 // pred_region
        // Predicated region
        $region21: #{tpu_custom_call.1} parent=19 // pred_check
          %p192 = pneg %p57
        $region22: #{tpu_custom_call.1} parent=19 // pred_check_branch
          %194 = sbr.rel (%p192) target = $region24
        $region23: #{tpu_custom_call.1} parent=19 // pred_region
          %s195 = sand.u32 %s47, 1
          %s196 = scalar_lea.sflag [#allocation3], %s195
          %s197 = sand.u32 %s47, 1
          %s198 = smul.addr %s197, 16
          %s199 = scalar_lea.vmem [#allocation2], %s198
          %s201 = ssub.s32 256, 256
          %202 = vsyncadd %s196, %s201
          %s203 = smul.addr %s30, 4
          %s204 = sadd.s32 %s31, %s203
          %s205 = smul.addr %s204, 128
          %s206 = scalar_lea.hbm %s0, %s205
          %s207 = sshll.u32 %s199, 4
          %s208 = int_to_ptr.vmem [resolvable:$true] %s207
          %213 = dma.hbm_to_vmem [thread:$0]  %s206, 256, %s208, %s196, 256, 128, 8
        $region24: #{tpu_custom_call.1} parent=19 // pred_fallthru
          _
        // Predicated region
        $region25: #{tpu_custom_call.1} parent=19 // pred_check
          %p214 = pneg %p87
        $region26: #{tpu_custom_call.1} parent=19 // pred_check_branch
          %216 = sbr.rel (%p214) target = $region28
        $region27: #{tpu_custom_call.1} parent=19 // pred_region
          %s217 = sand.u32 %s77, 1
          %s218 = scalar_lea.sflag [#allocation6], %s217
          %s219 = sand.u32 %s77, 1
          %s220 = smul.addr %s219, 16
          %s221 = scalar_lea.vmem [#allocation5], %s220
          %s222 = sadd.s32 %s31, 1
          %s224 = ssub.s32 256, 256
          %225 = vsyncadd %s218, %s224
          %s226 = smul.addr %s30, 4
          %s227 = sadd.s32 %s222, %s226
          %s228 = smul.addr %s227, 128
          %s229 = scalar_lea.hbm %s1, %s228
          %s230 = sshll.u32 %s221, 4
          %s231 = int_to_ptr.vmem [resolvable:$true] %s230
          %236 = dma.hbm_to_vmem [thread:$0]  %s229, 256, %s231, %s218, 256, 128, 8
        $region28: #{tpu_custom_call.1} parent=19 // pred_fallthru
          _
      $region20: #{tpu_custom_call.1} parent=5 // pred_fallthru
        _
      %p237 = scmp.le.s32.totalorder 1, %s23
      %p238 = scmp.lt.s32.totalorder %s23, 7
      %p239 = pnand %p237, %p238
      %p240 = pneg %p239
      // Predicated region
      $region29: #{tpu_custom_call.1} parent=5 // pred_check
        _
      $region30: #{tpu_custom_call.1} parent=5 // pred_check_branch
        %242 = sbr.rel (%p239) target = $region32
      $region31: #{tpu_custom_call.1} parent=5 // pred_region
        %s243 = ssub.s32 %s23, 1
        %s244 = sand.u32 %s50, 1
        %s245 = scalar_lea.sflag [#allocation3], %s244
        %s246 = sand.u32 %s50, 1
        %s247 = smul.addr %s246, 16
        %s248 = scalar_lea.vmem [#allocation2], %s247
        // Predicated region
        $region33: #{tpu_custom_call.1} parent=31 // pred_check
          %p249 = pneg %p63
        $region34: #{tpu_custom_call.1} parent=31 // pred_check_branch
          %251 = sbr.rel (%p249) target = $region36
        $region35: #{tpu_custom_call.1} parent=31 // pred_region
          %252 = dma.done %s245, 256
        $region36: #{tpu_custom_call.1} parent=31 // pred_fallthru
          _
        %s253 = sand.u32 %s80, 1
        %s254 = scalar_lea.sflag [#allocation6], %s253
        %s255 = sand.u32 %s80, 1
        %s256 = smul.addr %s255, 16
        %s257 = scalar_lea.vmem [#allocation5], %s256
        // Predicated region
        $region37: #{tpu_custom_call.1} parent=31 // pred_check
          %p258 = pneg %p93
        $region38: #{tpu_custom_call.1} parent=31 // pred_check_branch
          %260 = sbr.rel (%p258) target = $region40
        $region39: #{tpu_custom_call.1} parent=31 // pred_region
          %261 = dma.done %s254, 256
        $region40: #{tpu_custom_call.1} parent=31 // pred_fallthru
          _
        %s262 = sand.u32 %s50, 1
        %s263 = scalar_lea.sflag [#allocation3], %s262
        %s264 = sand.u32 %s50, 1
        %s265 = smul.addr %s264, 16
        %s266 = scalar_lea.vmem [#allocation2], %s265
        %p267 = pneg %p63
        %p268 = pneg %p60
        %s269 = sand.u32 %s80, 1
        %s270 = scalar_lea.sflag [#allocation6], %s269
        %s271 = sand.u32 %s80, 1
        %s272 = smul.addr %s271, 16
        %s273 = scalar_lea.vmem [#allocation5], %s272
        %p274 = pneg %p93
        %p275 = pneg %p90
        %p276 = pneg %p114
        %p277 = pneg %p111
        %p278 = pneg %p142
        %p279 = pneg %p139
        %s280 = sand.u32 %s129, 1
        %s281 = scalar_lea.sflag [#allocation4], %s280
        %s282 = sand.u32 %s129, 1
        %s283 = smul.addr %s282, 24
        %s284 = scalar_lea.vmem [#allocation7], %s283
        %p285 = pneg %p170
        %p286 = pneg %p167
        %s287 = sand.u32 %s157, 1
        %s288 = scalar_lea.sflag [#allocation9], %s287
        %s289 = sand.u32 %s157, 1
        %s290 = smul.addr %s289, 24
        %s291 = scalar_lea.vmem [#allocation8], %s290
        %s292 = sadd.s32 %s33, 1
        %v293 = vld [vmem:[%s248] sm:$0xff]
        %v294 = vld [vmem:[%s248 + $0x8] sm:$0xff]
        %v295 = vld [vmem:[%s257] sm:$0xff]
        %v296 = vld [vmem:[%s257 + $0x8] sm:$0xff]
        %301 = vrot.lane.b32.xlu0 %v293, 127
        %v302 = vpop.permute.xlu0 %301
        %303 = vrot.lane.b32.xlu0 %v295, 127
        %v304 = vpop.permute.xlu0 %303
        %305 = vrot.lane.b32.xlu0 %v294, 127
        %v306 = vpop.permute.xlu0 %305
        %307 = vrot.lane.b32.xlu0 %v296, 127
        %v308 = vpop.permute.xlu0 %307
        %vm309 = vcmask 1039360
        %v310 = vsel %vm309, %v302, %v304
        %v311 = vsel %vm309, %v306, %v308
        %v314 = vld [vmem:[%s2] sm:$0xff]
        %v315 = vld [vmem:[%s2 + $0x8] sm:$0xff]
        %v316 = vld [vmem:[%s2 + $0x10] sm:$0xff]
        %v317 = vld [vmem:[%s2 + $0x18] sm:$0xff]
        %v318 = vld [vmem:[%s2 + $0x20] sm:$0xff]
        %v319 = vld [vmem:[%s2 + $0x28] sm:$0xff]
        %vm320 = vcmask 261120
        %v322 = vsel %vm320, %v314, 0
        %v325 = vsel %vm320, %v315, 0
        %v328 = vsel %vm320, %v316, 0
        %v331 = vsel %vm320, %v317, 0
        %v334 = vsel %vm320, %v318, 0
        %v337 = vsel %vm320, %v319, 0
        %339 = vmatprep.subr.mxu0 0.0
        %340 = vmatpush1.msra.mxu0 %v293
        %341 = vmatprep.subr.mxu0 0.0
        %342 = vmatpush1.msra.mxu0 %v294
        %343 = vmatprep.subr.mxu0 0.0
        %344 = vmatpush1.msra.mxu0 %v310
        %345 = vmatprep.subr.mxu0 0.0
        %346 = vmatpush1.msra.mxu0 %v311
        %347 = vmatprep.subr.mxu0 0.0
        %348 = vmatpush1.msra.mxu0 0.0
        %349 = vmatprep.subr.mxu0 0.0
        %350 = vmatpush1.msra.mxu0 0.0
        %351 = vmatprep.subr.mxu0 0.0
        %352 = vmatpush1.msra.mxu0 0.0
        %353 = vmatprep.subr.mxu0 0.0
        %354 = vmatpush1.msra.mxu0 0.0
        %355 = vmatprep.subr.mxu0 0.0
        %356 = vmatpush1.msra.mxu0 0.0
        %357 = vmatprep.subr.mxu0 0.0
        %358 = vmatpush1.msra.mxu0 0.0
        %359 = vmatprep.subr.mxu0 0.0
        %360 = vmatpush1.msra.mxu0 0.0
        %361 = vmatprep.subr.mxu0 0.0
        %362 = vmatpush1.msra.mxu0 0.0
        %363 = vmatprep.subr.mxu0 0.0
        %364 = vmatpush1.msra.mxu0 0.0
        %365 = vmatprep.subr.mxu0 0.0
        %366 = vmatpush1.msra.mxu0 0.0
        %367 = vmatprep.subr.mxu0 0.0
        %368 = vmatpush1.msra.mxu0 0.0
        %369 = vmatprep.subr.mxu0 0.0
        %370 = vmatpush1.msra.mxu0 0.0
        %371 = vmatprep.subr.mxu0 0.0
        %372 = vmatpush1.msra.mxu0 0.0
        %373 = vmatprep.subr.mxu0 0.0
        %374 = vmatpush1.msra.mxu0 0.0
        %375 = vmatprep.subr.mxu0 0.0
        %376 = vmatpush1.msra.mxu0 0.0
        %377 = vmatprep.subr.mxu0 0.0
        %378 = vmatpush1.msra.mxu0 0.0
        %379 = vmatprep.subr.mxu0 0.0
        %380 = vmatpush1.msra.mxu0 0.0
        %381 = vmatprep.subr.mxu0 0.0
        %382 = vmatpush1.msra.mxu0 0.0
        %383 = vmatprep.subr.mxu0 0.0
        %384 = vmatpush1.msra.mxu0 0.0
        %385 = vmatprep.subr.mxu0 0.0
        %386 = vmatpush1.msra.mxu0 0.0
        %387 = vmatprep.subr.mxu0 0.0
        %388 = vmatpush1.msra.mxu0 0.0
        %389 = vmatprep.subr.mxu0 0.0
        %390 = vmatpush1.msra.mxu0 0.0
        %391 = vmatprep.subr.mxu0 0.0
        %392 = vmatpush1.msra.mxu0 0.0
        %393 = vmatprep.subr.mxu0 0.0
        %394 = vmatpush1.msra.mxu0 0.0
        %395 = vmatprep.subr.mxu0 0.0
        %396 = vmatpush1.msra.mxu0 0.0
        %397 = vmatprep.subr.mxu0 0.0
        %398 = vmatpush1.msra.mxu0 0.0
        %399 = vmatprep.subr.mxu0 0.0
        %400 = vmatpush1.msra.mxu0 0.0
        %401 = vmatprep.subr.mxu0 0.0
        %402 = vmatpush1.msra.mxu0 0.0
        %403 = vmatprep.mubr.f32.mxu0 0.0
        %404 = vmatmul.mubr.f32.gmra.mrb[0].mxu0 %v322
        %v405 = vpop.f32.mrb[0].mxu0
        %v406 = vadd.f32 0.0, %v405
        %v407 = vpop.f32.mrb[0].mxu0
        %408 = vmatprep.mubr.f32.mxu0 0.0
        %409 = vmatmul.mubr.f32.gmra.mrb[0].mxu0 %v325
        %v410 = vpop.f32.mrb[0].mxu0
        %v411 = vadd.f32 0.0, %v410
        %v412 = vpop.f32.mrb[0].mxu0
        %413 = vmatprep.mubr.f32.mxu0 0.0
        %414 = vmatmul.mubr.f32.gmra.mrb[0].mxu0 %v328
        %v415 = vpop.f32.mrb[0].mxu0
        %v416 = vadd.f32 0.0, %v415
        %v417 = vpop.f32.mrb[0].mxu0
        %418 = vmatprep.mubr.f32.mxu0 0.0
        %419 = vmatmul.mubr.f32.gmra.mrb[0].mxu0 %v331
        %v420 = vpop.f32.mrb[0].mxu0
        %v421 = vadd.f32 0.0, %v420
        %v422 = vpop.f32.mrb[0].mxu0
        %423 = vmatprep.mubr.f32.mxu0 0.0
        %424 = vmatmul.mubr.f32.gmra.mrb[0].mxu0 %v334
        %v425 = vpop.f32.mrb[0].mxu0
        %v426 = vadd.f32 0.0, %v425
        %v427 = vpop.f32.mrb[0].mxu0
        %428 = vmatprep.mubr.f32.mxu0 0.0
        %429 = vmatmul.mubr.f32.gmra.mrb[0].mxu0 %v337
        %v430 = vpop.f32.mrb[0].mxu0
        %v431 = vadd.f32 0.0, %v430
        %v432 = vpop.f32.mrb[0].mxu0
        %433 = vdwg.mxu0
        %v434 = vmul.f32 %v406, %v406
        %v435 = vmul.f32 %v411, %v411
        %v436 = vmul.f32 %v416, %v416
        %v437 = vmul.f32 %v421, %v421
        %v438 = vmul.f32 %v426, %v426
        %v439 = vmul.f32 %v431, %v431
        %v440 = vadd.f32 %v434, %v437
        %v441 = vadd.f32 %v435, %v438
        %v442 = vadd.f32 %v436, %v439
        %v443 = vrsqrt.pop %v440
        %v444 = vmul.f32 %v440, %v443
        %vm445 = vcmp.eq.f32.partialorder %v440, inf
        %v446 = vsel %vm445, %v440, %v444
        %vm447 = vcmp.eq.f32.partialorder %v440, 0.0
        %v448 = vand.u32 %v440, 2147483648
        %v449 = vsel %vm447, %v448, %v446
        %v450 = vrsqrt.pop %v441
        %v451 = vmul.f32 %v441, %v450
        %vm452 = vcmp.eq.f32.partialorder %v441, inf
        %v453 = vsel %vm452, %v441, %v451
        %vm454 = vcmp.eq.f32.partialorder %v441, 0.0
        %v455 = vand.u32 %v441, 2147483648
        %v456 = vsel %vm454, %v455, %v453
        %v457 = vrsqrt.pop %v442
        %v458 = vmul.f32 %v442, %v457
        %vm459 = vcmp.eq.f32.partialorder %v442, inf
        %v460 = vsel %vm459, %v442, %v458
        %vm461 = vcmp.eq.f32.partialorder %v442, 0.0
        %v462 = vand.u32 %v442, 2147483648
        %v463 = vsel %vm461, %v462, %v460
        %464 = vst [vmem:[%s284] sm:$0xff] %v449
        %465 = vst [vmem:[%s284 + $0x8] sm:$0xff] %v456
        %466 = vst [vmem:[%s284 + $0x10] sm:$0xff] %v463
        %v467 = vand.u32 2147483647, %v406
        %v468 = vand.u32 2147483647, %v411
        %v469 = vand.u32 2147483647, %v416
        %v470 = vand.u32 2147483647, %v421
        %v471 = vand.u32 2147483647, %v426
        %v472 = vand.u32 2147483647, %v431
        %v473 = vmax.f32 %v467, %v470
        %v474 = vmax.f32 %v468, %v471
        %v475 = vmax.f32 %v469, %v472
        %v476 = vmin.f32 %v467, %v470
        %v477 = vmin.f32 %v468, %v471
        %v478 = vmin.f32 %v469, %v472
        %v479 = vmax.f32 %v473, 1e-30
        %v480 = vmax.f32 %v474, 1e-30
        %v481 = vmax.f32 %v475, 1e-30
        %v482 = vrcp.pop %v479
        %v483 = vmul.f32 %v476, %v482
        %v484 = vrcp.pop %v480
        %v485 = vmul.f32 %v477, %v484
        %v486 = vrcp.pop %v481
        %v487 = vmul.f32 %v478, %v486
        %v488 = vmul.f32 %v483, %v483
        %v489 = vmul.f32 %v485, %v485
        %v490 = vmul.f32 %v487, %v487
        %v491 = vmul.f32 %v488, 0.002823639
        %v492 = vmul.f32 %v489, 0.002823639
        %v493 = vmul.f32 %v490, 0.002823639
        %v494 = vadd.f32 %v491, -0.015956903
        %v495 = vadd.f32 %v492, -0.015956903
        %v496 = vadd.f32 %v493, -0.015956903
        %v497 = vmul.f32 %v494, %v488
        %v498 = vmul.f32 %v495, %v489
        %v499 = vmul.f32 %v496, %v490
        %v500 = vadd.f32 %v497, 0.04250499
        %v501 = vadd.f32 %v498, 0.04250499
        %v502 = vadd.f32 %v499, 0.04250499
        %v503 = vmul.f32 %v500, %v488
        %v504 = vmul.f32 %v501, %v489
        %v505 = vmul.f32 %v502, %v490
        %v506 = vadd.f32 %v503, -0.07489009
        %v507 = vadd.f32 %v504, -0.07489009
        %v508 = vadd.f32 %v505, -0.07489009
        %v509 = vmul.f32 %v506, %v488
        %v510 = vmul.f32 %v507, %v489
        %v511 = vmul.f32 %v508, %v490
        %v512 = vadd.f32 %v509, 0.10634793
        %v513 = vadd.f32 %v510, 0.10634793
        %v514 = vadd.f32 %v511, 0.10634793
        %v515 = vmul.f32 %v512, %v488
        %v516 = vmul.f32 %v513, %v489
        %v517 = vmul.f32 %v514, %v490
        %v518 = vadd.f32 %v515, -0.14202736
        %v519 = vadd.f32 %v516, -0.14202736
        %v520 = vadd.f32 %v517, -0.14202736
        %v521 = vmul.f32 %v518, %v488
        %v522 = vmul.f32 %v519, %v489
        %v523 = vmul.f32 %v520, %v490
        %v524 = vadd.f32 %v521, 0.19992696
        %v525 = vadd.f32 %v522, 0.19992696
        %v526 = vadd.f32 %v523, 0.19992696
        %v527 = vmul.f32 %v524, %v488
        %v528 = vmul.f32 %v525, %v489
        %v529 = vmul.f32 %v526, %v490
        %v530 = vadd.f32 %v527, -0.33333102
        %v531 = vadd.f32 %v528, -0.33333102
        %v532 = vadd.f32 %v529, -0.33333102
        %v533 = vmul.f32 %v483, %v488
        %v534 = vmul.f32 %v485, %v489
        %v535 = vmul.f32 %v487, %v490
        %v536 = vmul.f32 %v533, %v530
        %v537 = vmul.f32 %v534, %v531
        %v538 = vmul.f32 %v535, %v532
        %v539 = vadd.f32 %v483, %v536
        %v540 = vadd.f32 %v485, %v537
        %v541 = vadd.f32 %v487, %v538
        %vm542 = vcmp.gt.f32.partialorder %v470, %v467
        %vm543 = vcmp.gt.f32.partialorder %v471, %v468
        %vm544 = vcmp.gt.f32.partialorder %v472, %v469
        %v545 = vsub.f32 1.5707964, %v539
        %v546 = vsub.f32 1.5707964, %v540
        %v547 = vsub.f32 1.5707964, %v541
        %v548 = vsel %vm542, %v545, %v539
        %v549 = vsel %vm543, %v546, %v540
        %v550 = vsel %vm544, %v547, %v541
        %vm551 = vcmp.lt.f32.partialorder %v406, 0.0
        %vm552 = vcmp.lt.f32.partialorder %v411, 0.0
        %vm553 = vcmp.lt.f32.partialorder %v416, 0.0
        %v554 = vsub.f32 3.1415927, %v548
        %v555 = vsub.f32 3.1415927, %v549
        %v556 = vsub.f32 3.1415927, %v550
        %v557 = vsel %vm551, %v554, %v548
        %v558 = vsel %vm552, %v555, %v549
        %v559 = vsel %vm553, %v556, %v550
        %vm560 = vcmp.lt.f32.partialorder %v421, 0.0
        %vm561 = vcmp.lt.f32.partialorder %v426, 0.0
        %vm562 = vcmp.lt.f32.partialorder %v431, 0.0
        %v563 = vsub.f32 0.0, %v557
        %v564 = vsub.f32 0.0, %v558
        %v565 = vsub.f32 0.0, %v559
        %v566 = vsel %vm560, %v563, %v557
        %v567 = vsel %vm561, %v564, %v558
        %v568 = vsel %vm562, %v565, %v559
        %569 = vst [vmem:[%s291] sm:$0xff] %v566
        %570 = vst [vmem:[%s291 + $0x8] sm:$0xff] %v567
        %571 = vst [vmem:[%s291 + $0x10] sm:$0xff] %v568
        %s572 = sand.u32 %s129, 1
        %s573 = scalar_lea.sflag [#allocation4], %s572
        %s574 = sand.u32 %s129, 1
        %s575 = smul.addr %s574, 24
        %s576 = scalar_lea.vmem [#allocation7], %s575
        %s577 = sand.u32 %s157, 1
        %s578 = scalar_lea.sflag [#allocation9], %s577
        %s579 = sand.u32 %s157, 1
        %s580 = smul.addr %s579, 24
        %s581 = scalar_lea.vmem [#allocation8], %s580
        // Predicated region
        $region41: #{tpu_custom_call.1} parent=31 // pred_check
          %p582 = pneg %p139
        $region42: #{tpu_custom_call.1} parent=31 // pred_check_branch
          %584 = sbr.rel (%p582) target = $region44
        $region43: #{tpu_custom_call.1} parent=31 // pred_region
          %s586 = ssub.s32 384, 384
          %587 = vsyncadd %s573, %s586
          %s588 = smul.addr %s32, 3
          %s589 = sadd.s32 %s33, %s588
          %s590 = smul.addr %s589, 128
          %s591 = scalar_lea.hbm %s3, %s590
          %s592 = sshll.u32 %s576, 4
          %s593 = int_to_ptr.vmem [resolvable:$true] %s592
          %598 = dma.vmem_to_hbm [thread:$0]  %s593, 384, %s591, %s573, 128, 128, 8
        $region44: #{tpu_custom_call.1} parent=31 // pred_fallthru
          _
        // Predicated region
        $region45: #{tpu_custom_call.1} parent=31 // pred_check
          %p599 = pneg %p167
        $region46: #{tpu_custom_call.1} parent=31 // pred_check_branch
          %601 = sbr.rel (%p599) target = $region48
        $region47: #{tpu_custom_call.1} parent=31 // pred_region
          %s603 = ssub.s32 384, 384
          %604 = vsyncadd %s578, %s603
          %s605 = smul.addr %s32, 3
          %s606 = sadd.s32 %s33, %s605
          %s607 = smul.addr %s606, 128
          %s608 = scalar_lea.hbm %s4, %s607
          %s609 = sshll.u32 %s581, 4
          %s610 = int_to_ptr.vmem [resolvable:$true] %s609
          %615 = dma.vmem_to_hbm [thread:$0]  %s610, 384, %s608, %s578, 128, 128, 8
        $region48: #{tpu_custom_call.1} parent=31 // pred_fallthru
          _
      $region32: #{tpu_custom_call.1} parent=5 // pred_fallthru
        _
      %p616 = scmp.le.s32.totalorder 2, %s23
      // Predicated region
      $region49: #{tpu_custom_call.1} parent=5 // pred_check
        %p617 = pneg %p616
      $region50: #{tpu_custom_call.1} parent=5 // pred_check_branch
        %619 = sbr.rel (%p617) target = $region52
      $region51: #{tpu_custom_call.1} parent=5 // pred_region
        %s620 = ssub.s32 %s23, 2
        // Predicated region
        $region53: #{tpu_custom_call.1} parent=51 // pred_check
          %p621 = pneg %p145
        $region54: #{tpu_custom_call.1} parent=51 // pred_check_branch
          %623 = sbr.rel (%p621) target = $region56
        $region55: #{tpu_custom_call.1} parent=51 // pred_region
          %s624 = sand.u32 %s130, 1
          %s625 = scalar_lea.sflag [#allocation4], %s624
          %s626 = sand.u32 %s130, 1
          %s627 = smul.addr %s626, 24
          %s628 = scalar_lea.vmem [#allocation7], %s627
          %629 = dma.done %s625, 384
        $region56: #{tpu_custom_call.1} parent=51 // pred_fallthru
          _
        // Predicated region
        $region57: #{tpu_custom_call.1} parent=51 // pred_check
          %p630 = pneg %p173
        $region58: #{tpu_custom_call.1} parent=51 // pred_check_branch
          %632 = sbr.rel (%p630) target = $region60
        $region59: #{tpu_custom_call.1} parent=51 // pred_region
          %s633 = sand.u32 %s158, 1
          %s634 = scalar_lea.sflag [#allocation9], %s633
          %s635 = sand.u32 %s158, 1
          %s636 = smul.addr %s635, 24
          %s637 = scalar_lea.vmem [#allocation8], %s636
          %638 = dma.done %s634, 384
        $region60: #{tpu_custom_call.1} parent=51 // pred_fallthru
          _
      $region52: #{tpu_custom_call.1} parent=5 // pred_fallthru
        _
    $region6: #{tpu_custom_call.1} parent=1 // loop_footer
      %s27 = sadd.s32 1, %s23
    $region7: #{tpu_custom_call.1} parent=1 // loop_footer_branch
      %22 = sbr.rel target = $region3
    $region8: #{tpu_custom_call.1} parent=1 // loop_exit
      _
    %639 = vsyncpa [#allocation3], 1
    %s640 = scalar_lea.sflag [#allocation3], 1
    %641 = vsyncpa %s640, 1
    %642 = vsyncpa [#allocation6], 1
    %s643 = scalar_lea.sflag [#allocation6], 1
    %644 = vsyncpa %s643, 1
    %645 = vsyncpa [#allocation4], 1
    %s646 = scalar_lea.sflag [#allocation4], 1
    %647 = vsyncpa %s646, 1
    %648 = vsyncpa [#allocation9], 1
    %s649 = scalar_lea.sflag [#allocation9], 1
    %650 = vsyncpa %s649, 1

</llo_original>
